<compile_context>
chip_gen: v7x
topology: tpu7x:2x2x1
jax: 0.10.0
libtpu: 0.0.40
codegen_flags: <defaults>
</compile_context>

<pallas_src>
import jax
import jax.numpy as jnp
from jax.experimental import pallas as pl
from jax.experimental.pallas import tpu as pltpu


# ---------------------------------------------------------------------------
# One-time preparation (NOT in the per-forward path).
# ---------------------------------------------------------------------------
def prepare_hetero_params(params):
    """Fold Linear(32,1) into the conv weights and pack one (1, 2*F_p+F_a+1) row.

    Valid ONLY because model_config=None => no nonlinearity between HeteroConv
    and out_lin.  Call once at parameter-load time (review item 1):
      o = (A_hat@Xp)@(Wg Wo) + Xp@(Wr Wo) + (mean(Xa))@(Wl Wo) + ((bg+bl)Wo + bo)
    """
    w_out = params["w_out"].astype(jnp.float32)                       # (H, 1)
    cols = [
        params["w_gcn"].astype(jnp.float32) @ w_out,                  # (F_p, 1) GCN path
        params["w_sage_r"].astype(jnp.float32) @ w_out,               # (F_p, 1) SAGE root
        params["w_sage_l"].astype(jnp.float32) @ w_out,               # (F_a, 1) SAGE nbr
        (params["b_gcn"] + params["b_sage_l"]).astype(jnp.float32) @ w_out
        + params["b_out"].astype(jnp.float32),                        # (1, 1) fused bias
    ]
    return jnp.concatenate(cols, axis=0).reshape(1, -1)               # (1, 2F_p+F_a+1)


def pack_edge_indices(ei_pp, ei_ap):
    """Pack both relations into ONE int32 array (review item 3).

    Rows: [src_pp, dst_pp, src_ap, dst_ap].  Shorter relation is lane-padded
    with -1, which matches no node in the in-kernel one-hot build.
    Call once per graph (data prep), outside the jitted forward.
    """
    e_max = max(ei_pp.shape[1], ei_ap.shape[1])

    def pad(ei):
        return jnp.pad(ei.astype(jnp.int32),
                       ((0, 0), (0, e_max - ei.shape[1])),
                       constant_values=-1)

    return jnp.concatenate([pad(ei_pp), pad(ei_ap)], axis=0)          # (4, e_max) int32


# ---------------------------------------------------------------------------
# Pallas kernel: edge table -> normalized adjacencies -> fused conv+head, in VMEM.
# ---------------------------------------------------------------------------
def _hetero_fused_kernel(
    edges_ref,   # [4, E_max] int32: rows = src_pp, dst_pp, src_ap, dst_ap (-1 pad)
    xp_ref,      # [N_p, F_p] f32 paper features
    xa_ref,      # [N_a, F_a] f32 author features
    w_ref,       # [1, 2*F_p + F_a + 1] f32 folded weight row:
                 #   lanes [0,F_p)         : W_gcn   @ W_out
                 #   lanes [F_p,2F_p)      : W_sage_r@ W_out
                 #   lanes [2F_p,2F_p+F_a) : W_sage_l@ W_out
                 #   lane   2F_p+F_a       : fused bias
    o_ref,       # [N_p, 1] f32 logits
):
    f32 = jnp.float32
    n_p, f_p = xp_ref.shape
    n_a, f_a = xa_ref.shape
    e_max = edges_ref.shape[1]

    def one_hot(vals_row, n_nodes):
        # vals_row (1, e_max) -> (n_nodes, e_max); padded (-1) edges match nothing.
        return jnp.where(
            jax.lax.broadcasted_iota(jnp.int32, (n_nodes, e_max), 0) == vals_row,
            1.0, 0.0)

    def adjacency(src_row, dst_row, n_dst, n_src):
        # A[d, s] = #edges s->d.  Contract the edge axis as A = OHd @ OHs^T;
        # the transposed-RHS contraction is MXU-native, so no XLU vxpose /
        # edge-major rebuild is needed (review item 5).
        return jax.lax.dot_general(
            one_hot(dst_row, n_dst), one_hot(src_row, n_src),
            dimension_numbers=(((1,), (1,)), ((), ())),
            preferred_element_type=f32)

    # --- GCNConv('paper','to','paper'): add_remaining_self_loops + sym-norm ---
    a_pp = adjacency(edges_ref[0:1, :], edges_ref[1:2, :], n_p, n_p)
    eye = jnp.where(
        jax.lax.broadcasted_iota(jnp.int32, (n_p, n_p), 0)
        == jax.lax.broadcasted_iota(jnp.int32, (n_p, n_p), 1), 1.0, 0.0)
    a_pp = a_pp * (1.0 - eye) + eye          # drop existing self-loops, add weight-1 ones
    dinv = jax.lax.rsqrt(jnp.sum(a_pp, axis=1, keepdims=True))   # deg >= 1 (self-loop)

    # --- SAGEConv('author','to','paper'): mean aggregation --------------------
    a_ap = adjacency(edges_ref[2:3, :], edges_ref[3:4, :], n_p, n_a)   # (N_p, N_a)
    deg_ap = jnp.sum(a_ap, axis=1, keepdims=True)
    # Exact divide kept (review item 6 skipped): mean aggregation feeds the
    # correctness check directly and this kernel is launch-overhead bound, so
    # the approx-EUP micro-win is not worth the accuracy risk.
    inv_ap = jnp.where(deg_ap > 0.0, 1.0 / jnp.maximum(deg_ap, 1.0), 0.0)

    xp = xp_ref[...]
    # A_hat @ Xp = D^{-1/2} (A_sl (D^{-1/2} Xp)) -- only column scalings needed.
    gcn_agg = dinv * jnp.dot(a_pp, dinv * xp, preferred_element_type=f32)       # (N_p, F_p)
    # mean_agg(Xa): rows with no in-edges stay 0, like PyG.
    sage_agg = inv_ap * jnp.dot(a_ap, xa_ref[...], preferred_element_type=f32)  # (N_p, F_a)

    # --- single fused projection + HeteroConv sum + out_lin (review item 4) ---
    # Output feature dim is 1 after folding the head, so a broadcast-multiply +
    # lane reduction replaces three MXU pushes, three VALU adds and a bias add.
    lhs = jnp.concatenate(
        [gcn_agg, xp, sage_agg, jnp.ones((n_p, 1), f32)], axis=-1)   # (N_p, 2F_p+F_a+1)
    o_ref[...] = jnp.sum(lhs * w_ref[...], axis=-1, keepdims=True)   # (N_p, 1)


# ---------------------------------------------------------------------------
# Per-forward wrapper: exactly one XLA op (the pallas_call).
# ---------------------------------------------------------------------------
@jax.jit
def hetero_conv_model_forward(x_paper, x_author, edges_packed, w_row):
    """Inputs must already be f32 / int32 (see prepare_hetero_params /
    pack_edge_indices).  No auxiliary XLA ops in the jit (review items 1-3)."""
    n_p = x_paper.shape[0]
    vmem = pl.BlockSpec(memory_space=pltpu.MemorySpace.VMEM)
    return pl.pallas_call(
        _hetero_fused_kernel,
        out_shape=jax.ShapeDtypeStruct((n_p, 1), jnp.float32),
        in_specs=[vmem, vmem, vmem, vmem],
        out_specs=vmem,
    )(edges_packed, x_paper, x_author, w_row)


# ---------------------------------------------------------------------------
# Plain-JAX reference helpers (used only for the correctness check below).
# ---------------------------------------------------------------------------
def gcn_norm_dense(edge_index, num_nodes):
    src, dst = edge_index[0], edge_index[1]
    a = jnp.zeros((num_nodes, num_nodes), jnp.float32).at[dst, src].add(1.0)
    eye = jnp.eye(num_nodes, dtype=jnp.float32)
    a = a * (1.0 - eye) + eye                                  # add_remaining_self_loops
    deg = a.sum(axis=1)
    dinv = jax.lax.rsqrt(deg)
    return dinv[:, None] * a * dinv[None, :]


def mean_agg_dense(edge_index, num_src, num_dst):
    src, dst = edge_index[0], edge_index[1]
    a = jnp.zeros((num_dst, num_src), jnp.float32).at[dst, src].add(1.0)
    deg = a.sum(axis=1, keepdims=True)
    return jnp.where(deg > 0, a / jnp.maximum(deg, 1.0), 0.0)


# ---------------------------------------------------------------------------
if __name__ == "__main__":
    key = jax.random.PRNGKey(0)
    ks = jax.random.split(key, 12)

    # Shapes from the conftest fixture.
    N_P, F_P = 8, 16      # paper nodes / features
    N_A, F_A = 10, 8      # author nodes / features
    H = 32                # HeteroConv hidden size
    E = 10                # edges per relation

    x_paper = jax.random.normal(ks[0], (N_P, F_P), jnp.float32)
    x_author = jax.random.normal(ks[1], (N_A, F_A), jnp.float32)

    # Edge indices (row 0 = src, row 1 = dst).
    ei_pp = jnp.stack([
        jax.random.randint(ks[2], (E,), 0, N_P),
        jax.random.randint(ks[3], (E,), 0, N_P),
    ])
    ei_ap = jnp.stack([
        jax.random.randint(ks[4], (E,), 0, N_A),
        jax.random.randint(ks[5], (E,), 0, N_P),
    ])
    # ('paper','to','author') edges exist in the fixture, but that conv only
    # feeds out_dict['author'], which forward() never reads -> not computed.

    # Deterministic synthetic parameters (weights stored as [F_in, F_out]).
    def init_w(k, fan_in, fan_out):
        return jax.random.normal(k, (fan_in, fan_out), jnp.float32) / jnp.sqrt(float(fan_in))

    params = {
        "w_gcn":    init_w(ks[6], F_P, H),                     # GCNConv.lin (bias=False)
        "b_gcn":    jnp.zeros((1, H), jnp.float32),            # GCNConv.bias
        "w_sage_l": init_w(ks[7], F_A, H),                     # SAGEConv.lin_l
        "b_sage_l": 0.01 * jnp.ones((1, H), jnp.float32),      # SAGEConv.lin_l bias
        "w_sage_r": init_w(ks[8], F_P, H),                     # SAGEConv.lin_r (bias=False)
        "w_out":    init_w(ks[9], H, 1),                       # out_lin.weight
        "b_out":    0.1 * jnp.ones((1, 1), jnp.float32),       # out_lin.bias
    }

    # One-time prep (OUT of the per-forward path): folded weight row + packed edges.
    w_row = jax.block_until_ready(prepare_hetero_params(params))     # (1, 2*F_P+F_A+1)
    edges = jax.block_until_ready(pack_edge_indices(ei_pp, ei_ap))   # (4, E) int32

    out = hetero_conv_model_forward(x_paper, x_author, edges, w_row)
    out = jax.block_until_ready(out)

    assert out.shape == (N_P, 1) and out.dtype == jnp.float32

    # Pure-JAX reference (unfused) for sanity.
    a_gcn = gcn_norm_dense(ei_pp, N_P)
    a_mean = mean_agg_dense(ei_ap, N_A, N_P)
    ref = (
        a_gcn @ (x_paper @ params["w_gcn"]) + params["b_gcn"]
        + (a_mean @ x_author) @ params["w_sage_l"] + params["b_sage_l"]
        + x_paper @ params["w_sage_r"]
    ) @ params["w_out"] + params["b_out"]
    assert jnp.allclose(out, ref, atol=1e-3, rtol=1e-3)

    print("KERNEL_OK")
</pallas_src>

<mosaic_0001>
module attributes {stable_mosaic.version = 11 : i64} {
  func.func @_hetero_fused_kernel(%arg0: memref<4x10xi32, #tpu.memory_space<vmem>>, %arg1: memref<8x16xf32, #tpu.memory_space<vmem>>, %arg2: memref<10x8xf32, #tpu.memory_space<vmem>>, %arg3: memref<1x41xf32, #tpu.memory_space<vmem>>, %arg4: memref<8x1xf32, #tpu.memory_space<vmem>>) attributes {dimension_semantics = [], scalar_prefetch = 0 : i64, scratch_operands = 0 : i64, tpu.core_type = #tpu.core_type<tc>} {
    %c0 = arith.constant 0 : index
    %c0_0 = arith.constant 0 : index
    %0 = vector.load %arg0[%c0, %c0_0] : memref<4x10xi32, #tpu.memory_space<vmem>>, vector<1x10xi32>
    %c1 = arith.constant 1 : index
    %c0_1 = arith.constant 0 : index
    %1 = vector.load %arg0[%c1, %c0_1] : memref<4x10xi32, #tpu.memory_space<vmem>>, vector<1x10xi32>
    %2 = tpu.iota {dimensions = array<i32: 0>} : vector<8x10xi32>
    %3 = vector.broadcast %1 : vector<1x10xi32> to vector<8x10xi32>
    %4 = arith.cmpi eq, %2, %3 : vector<8x10xi32>
    %cst = arith.constant 1.000000e+00 : f32
    %cst_2 = arith.constant 0.000000e+00 : f32
    %5 = vector.broadcast %cst : f32 to vector<8x10xf32>
    %6 = vector.broadcast %cst_2 : f32 to vector<8x10xf32>
    %7 = arith.select %4, %5, %6 : vector<8x10xi1>, vector<8x10xf32>
    %8 = tpu.iota {dimensions = array<i32: 0>} : vector<8x10xi32>
    %9 = vector.broadcast %0 : vector<1x10xi32> to vector<8x10xi32>
    %10 = arith.cmpi eq, %8, %9 : vector<8x10xi32>
    %cst_3 = arith.constant 1.000000e+00 : f32
    %cst_4 = arith.constant 0.000000e+00 : f32
    %11 = vector.broadcast %cst_3 : f32 to vector<8x10xf32>
    %12 = vector.broadcast %cst_4 : f32 to vector<8x10xf32>
    %13 = arith.select %10, %11, %12 : vector<8x10xi1>, vector<8x10xf32>
    %cst_5 = arith.constant dense<0.000000e+00> : vector<8x8xf32>
    %14 = tpu.matmul %7, %13, %cst_5 {dimension_numbers = #tpu.dot_dimension_numbers<[1], [1], [0], [0], [0, 0, 1, 0], [], []>} : vector<8x10xf32>, vector<8x10xf32>, vector<8x8xf32> -> vector<8x8xf32>
    %15 = tpu.iota {dimensions = array<i32: 0>} : vector<8x8xi32>
    %16 = tpu.iota {dimensions = array<i32: 1>} : vector<8x8xi32>
    %17 = arith.cmpi eq, %15, %16 : vector<8x8xi32>
    %cst_6 = arith.constant 1.000000e+00 : f32
    %cst_7 = arith.constant 0.000000e+00 : f32
    %18 = vector.broadcast %cst_6 : f32 to vector<8x8xf32>
    %19 = vector.broadcast %cst_7 : f32 to vector<8x8xf32>
    %20 = arith.select %17, %18, %19 : vector<8x8xi1>, vector<8x8xf32>
    %cst_8 = arith.constant 1.000000e+00 : f32
    %21 = vector.broadcast %cst_8 : f32 to vector<8x8xf32>
    %22 = arith.subf %21, %20 : vector<8x8xf32>
    %23 = arith.mulf %14, %22 : vector<8x8xf32>
    %24 = arith.addf %23, %20 : vector<8x8xf32>
    %cst_9 = arith.constant dense<0.000000e+00> : vector<8xf32>
    %25 = vector.multi_reduction <add>, %24, %cst_9 [1] : vector<8x8xf32> to vector<8xf32>
    %26 = vector.shape_cast %25 : vector<8xf32> to vector<8x1xf32>
    %27 = math.rsqrt %26 : vector<8x1xf32>
    %c2 = arith.constant 2 : index
    %c0_10 = arith.constant 0 : index
    %28 = vector.load %arg0[%c2, %c0_10] : memref<4x10xi32, #tpu.memory_space<vmem>>, vector<1x10xi32>
    %c3 = arith.constant 3 : index
    %c0_11 = arith.constant 0 : index
    %29 = vector.load %arg0[%c3, %c0_11] : memref<4x10xi32, #tpu.memory_space<vmem>>, vector<1x10xi32>
    %30 = tpu.iota {dimensions = array<i32: 0>} : vector<8x10xi32>
    %31 = vector.broadcast %29 : vector<1x10xi32> to vector<8x10xi32>
    %32 = arith.cmpi eq, %30, %31 : vector<8x10xi32>
    %cst_12 = arith.constant 1.000000e+00 : f32
    %cst_13 = arith.constant 0.000000e+00 : f32
    %33 = vector.broadcast %cst_12 : f32 to vector<8x10xf32>
    %34 = vector.broadcast %cst_13 : f32 to vector<8x10xf32>
    %35 = arith.select %32, %33, %34 : vector<8x10xi1>, vector<8x10xf32>
    %36 = tpu.iota {dimensions = array<i32: 0>} : vector<10x10xi32>
    %37 = vector.broadcast %28 : vector<1x10xi32> to vector<10x10xi32>
    %38 = arith.cmpi eq, %36, %37 : vector<10x10xi32>
    %cst_14 = arith.constant 1.000000e+00 : f32
    %cst_15 = arith.constant 0.000000e+00 : f32
    %39 = vector.broadcast %cst_14 : f32 to vector<10x10xf32>
    %40 = vector.broadcast %cst_15 : f32 to vector<10x10xf32>
    %41 = arith.select %38, %39, %40 : vector<10x10xi1>, vector<10x10xf32>
    %cst_16 = arith.constant dense<0.000000e+00> : vector<8x10xf32>
    %42 = tpu.matmul %35, %41, %cst_16 {dimension_numbers = #tpu.dot_dimension_numbers<[1], [1], [0], [0], [0, 0, 1, 0], [], []>} : vector<8x10xf32>, vector<10x10xf32>, vector<8x10xf32> -> vector<8x10xf32>
    %cst_17 = arith.constant dense<0.000000e+00> : vector<8xf32>
    %43 = vector.multi_reduction <add>, %42, %cst_17 [1] : vector<8x10xf32> to vector<8xf32>
    %44 = vector.shape_cast %43 : vector<8xf32> to vector<8x1xf32>
    %cst_18 = arith.constant 0.000000e+00 : f32
    %45 = vector.broadcast %cst_18 : f32 to vector<8x1xf32>
    %46 = arith.cmpf ogt, %44, %45 : vector<8x1xf32>
    %cst_19 = arith.constant 1.000000e+00 : f32
    %47 = vector.broadcast %cst_19 : f32 to vector<8x1xf32>
    %48 = arith.maximumf %44, %47 : vector<8x1xf32>
    %cst_20 = arith.constant 1.000000e+00 : f32
    %49 = vector.broadcast %cst_20 : f32 to vector<8x1xf32>
    %50 = arith.divf %49, %48 : vector<8x1xf32>
    %cst_21 = arith.constant 0.000000e+00 : f32
    %51 = vector.broadcast %cst_21 : f32 to vector<8x1xf32>
    %52 = arith.select %46, %50, %51 : vector<8x1xi1>, vector<8x1xf32>
    %c0_22 = arith.constant 0 : index
    %c0_23 = arith.constant 0 : index
    %53 = vector.load %arg1[%c0_22, %c0_23] : memref<8x16xf32, #tpu.memory_space<vmem>>, vector<8x16xf32>
    %54 = vector.broadcast %27 : vector<8x1xf32> to vector<8x16xf32>
    %55 = arith.mulf %54, %53 : vector<8x16xf32>
    %cst_24 = arith.constant dense<0.000000e+00> : vector<8x16xf32>
    %56 = tpu.matmul %24, %55, %cst_24 {dimension_numbers = #tpu.dot_dimension_numbers<[1], [0], [0], [1], [0, 0, 1, 1], [], []>} : vector<8x8xf32>, vector<8x16xf32>, vector<8x16xf32> -> vector<8x16xf32>
    %57 = vector.broadcast %27 : vector<8x1xf32> to vector<8x16xf32>
    %58 = arith.mulf %57, %56 : vector<8x16xf32>
    %c0_25 = arith.constant 0 : index
    %c0_26 = arith.constant 0 : index
    %59 = vector.load %arg2[%c0_25, %c0_26] : memref<10x8xf32, #tpu.memory_space<vmem>>, vector<10x8xf32>
    %cst_27 = arith.constant dense<0.000000e+00> : vector<8x8xf32>
    %60 = tpu.matmul %42, %59, %cst_27 {dimension_numbers = #tpu.dot_dimension_numbers<[1], [0], [0], [1], [0, 0, 1, 1], [], []>} : vector<8x10xf32>, vector<10x8xf32>, vector<8x8xf32> -> vector<8x8xf32>
    %61 = vector.broadcast %52 : vector<8x1xf32> to vector<8x8xf32>
    %62 = arith.mulf %61, %60 : vector<8x8xf32>
    %cst_28 = arith.constant 1.000000e+00 : f32
    %63 = vector.broadcast %cst_28 : f32 to vector<8x1xf32>
    %64 = tpu.concatenate %58, %53, %62, %63 in 1 : vector<8x16xf32>, vector<8x16xf32>, vector<8x8xf32>, vector<8x1xf32> -> vector<8x41xf32>
    %c0_29 = arith.constant 0 : index
    %c0_30 = arith.constant 0 : index
    %65 = vector.load %arg3[%c0_29, %c0_30] : memref<1x41xf32, #tpu.memory_space<vmem>>, vector<1x41xf32>
    %66 = vector.broadcast %65 : vector<1x41xf32> to vector<8x41xf32>
    %67 = arith.mulf %64, %66 : vector<8x41xf32>
    %cst_31 = arith.constant dense<0.000000e+00> : vector<8xf32>
    %68 = vector.multi_reduction <add>, %67, %cst_31 [1] : vector<8x41xf32> to vector<8xf32>
    %69 = vector.shape_cast %68 : vector<8xf32> to vector<8x1xf32>
    %c0_32 = arith.constant 0 : index
    %c0_33 = arith.constant 0 : index
    %70 = vector.load %arg4[%c0_32, %c0_33] : memref<8x1xf32, #tpu.memory_space<vmem>>, vector<8x1xf32>
    tpu.vector_store %arg4[%c0_32, %c0_33], %69 {strides = array<i32>} : memref<8x1xf32, #tpu.memory_space<vmem>>, vector<8x1xf32>,
    return
  }
}

</mosaic_0001>

<llo_original>
// kernel: hetero_conv_model_forward.1
$region0: #{hetero_conv_model_forward.1}
  #allocation0 [shape = 'u32[]', space=smem, size = 0x4, offset = 0x4, fixed_abs, tag = 'smem constant byte address 0x4 - core index']
  #allocation1 [shape = 'u32[144,128]{1,0:T(1,128)}', space=vmem, size = 0x12000, scoped, tag = 'internal scratch']
  %s0 = inlined_call_operand.vmem [shape: s32[4,10], index: 0, kind: input, shape index: {}]
  %s1 = inlined_call_operand.vmem [shape: f32[8,16], index: 1, kind: input, shape index: {}]
  %s2 = inlined_call_operand.vmem [shape: f32[10,8], index: 2, kind: input, shape index: {}]
  %s3 = inlined_call_operand.vmem [shape: f32[1,41], index: 3, kind: input, shape index: {}]
  %s4 = inlined_call_operand.vmem [shape: f32[8,1], index: 4, kind: output, shape index: {}]
  %s5 = sld [smem:[#allocation0]]
  $region26: #{hetero_conv_model_forward.1} parent=0
    _
  %s7 = ssub.s32 1, %s5
  %s8 = scalar_select 0, %s7, %s5
  // Predicated region
  $region2: #{hetero_conv_model_forward.1} parent=0 // pred_check
    _
  $region3: #{hetero_conv_model_forward.1} parent=0 // pred_check_branch
    %10 = sbr.rel (0) target = $region5
  $region4: #{hetero_conv_model_forward.1} parent=0 // pred_region
    _
  $region5: #{hetero_conv_model_forward.1} parent=0 // pred_fallthru
    _
  // Predicated region
  $region6: #{hetero_conv_model_forward.1} parent=0 // pred_check
    _
  $region7: #{hetero_conv_model_forward.1} parent=0 // pred_check_branch
    %12 = sbr.rel (0) target = $region9
  $region8: #{hetero_conv_model_forward.1} parent=0 // pred_region
    _
  $region9: #{hetero_conv_model_forward.1} parent=0 // pred_fallthru
    _
  // Predicated region
  $region10: #{hetero_conv_model_forward.1} parent=0 // pred_check
    _
  $region11: #{hetero_conv_model_forward.1} parent=0 // pred_check_branch
    %14 = sbr.rel (0) target = $region13
  $region12: #{hetero_conv_model_forward.1} parent=0 // pred_region
    _
  $region13: #{hetero_conv_model_forward.1} parent=0 // pred_fallthru
    _
  // Predicated region
  $region14: #{hetero_conv_model_forward.1} parent=0 // pred_check
    _
  $region15: #{hetero_conv_model_forward.1} parent=0 // pred_check_branch
    %16 = sbr.rel (0) target = $region17
  $region16: #{hetero_conv_model_forward.1} parent=0 // pred_region
    _
  $region17: #{hetero_conv_model_forward.1} parent=0 // pred_fallthru
    _
  %v17 = vld [vmem:[%s0] sm:$0x1]
  %v18 = vld [vmem:[%s0 + $0x1] sm:$0x1]
  %v19 = vlaneseq
  %v20 = vshrl.u32 %v19, 7
  %v21 = vlaneseq
  %v22 = vshrl.u32 %v21, 7
  %v23 = vsub.s32 0, %v22
  %v24 = vrot.slane %v18, %v23
  %vm25 = vcmp.eq.s32.totalorder %v20, %v24
  %v26 = vsel %vm25, 1.0, 0.0
  %v27 = vlaneseq
  %v28 = vshrl.u32 %v27, 7
  %v29 = vsub.s32 0, %v28
  %v30 = vrot.slane %v17, %v29
  %vm31 = vcmp.eq.s32.totalorder %v20, %v30
  %v32 = vsel %vm31, 1.0, 0.0
  %vm33 = vcmask 80896
  %v35 = vsel %vm33, %v26, 0
  %v38 = vsel %vm33, %v32, 0
  %40 = vmatprep.subr.mxu0 0.0
  %41 = vmatpush1.xpose.msra.mxu0 %v38
  %42 = vmatprep.subr.mxu0 0.0
  %43 = vmatpush1.xpose.msra.mxu0 0.0
  %44 = vmatprep.subr.mxu0 0.0
  %45 = vmatpush1.xpose.msra.mxu0 0.0
  %46 = vmatprep.subr.mxu0 0.0
  %47 = vmatpush1.xpose.msra.mxu0 0.0
  %48 = vmatprep.subr.mxu0 0.0
  %49 = vmatpush1.xpose.msra.mxu0 0.0
  %50 = vmatprep.subr.mxu0 0.0
  %51 = vmatpush1.xpose.msra.mxu0 0.0
  %52 = vmatprep.subr.mxu0 0.0
  %53 = vmatpush1.xpose.msra.mxu0 0.0
  %54 = vmatprep.subr.mxu0 0.0
  %55 = vmatpush1.xpose.msra.mxu0 0.0
  %56 = vmatprep.subr.mxu0 0.0
  %57 = vmatpush1.xpose.msra.mxu0 0.0
  %58 = vmatprep.subr.mxu0 0.0
  %59 = vmatpush1.xpose.msra.mxu0 0.0
  %60 = vmatprep.subr.mxu0 0.0
  %61 = vmatpush1.xpose.msra.mxu0 0.0
  %62 = vmatprep.subr.mxu0 0.0
  %63 = vmatpush1.xpose.msra.mxu0 0.0
  %64 = vmatprep.subr.mxu0 0.0
  %65 = vmatpush1.xpose.msra.mxu0 0.0
  %66 = vmatprep.subr.mxu0 0.0
  %67 = vmatpush1.xpose.msra.mxu0 0.0
  %68 = vmatprep.subr.mxu0 0.0
  %69 = vmatpush1.xpose.msra.mxu0 0.0
  %70 = vmatprep.subr.mxu0 0.0
  %71 = vmatpush1.xpose.msra.mxu0 0.0
  %72 = vmatprep.subr.mxu0 0.0
  %73 = vmatpush1.xpose.msra.mxu0 0.0
  %74 = vmatprep.subr.mxu0 0.0
  %75 = vmatpush1.xpose.msra.mxu0 0.0
  %76 = vmatprep.subr.mxu0 0.0
  %77 = vmatpush1.xpose.msra.mxu0 0.0
  %78 = vmatprep.subr.mxu0 0.0
  %79 = vmatpush1.xpose.msra.mxu0 0.0
  %80 = vmatprep.subr.mxu0 0.0
  %81 = vmatpush1.xpose.msra.mxu0 0.0
  %82 = vmatprep.subr.mxu0 0.0
  %83 = vmatpush1.xpose.msra.mxu0 0.0
  %84 = vmatprep.subr.mxu0 0.0
  %85 = vmatpush1.xpose.msra.mxu0 0.0
  %86 = vmatprep.subr.mxu0 0.0
  %87 = vmatpush1.xpose.msra.mxu0 0.0
  %88 = vmatprep.subr.mxu0 0.0
  %89 = vmatpush1.xpose.msra.mxu0 0.0
  %90 = vmatprep.subr.mxu0 0.0
  %91 = vmatpush1.xpose.msra.mxu0 0.0
  %92 = vmatprep.subr.mxu0 0.0
  %93 = vmatpush1.xpose.msra.mxu0 0.0
  %94 = vmatprep.subr.mxu0 0.0
  %95 = vmatpush1.xpose.msra.mxu0 0.0
  %96 = vmatprep.subr.mxu0 0.0
  %97 = vmatpush1.xpose.msra.mxu0 0.0
  %98 = vmatprep.subr.mxu0 0.0
  %99 = vmatpush1.xpose.msra.mxu0 0.0
  %100 = vmatprep.subr.mxu0 0.0
  %101 = vmatpush1.xpose.msra.mxu0 0.0
  %102 = vmatprep.subr.mxu0 0.0
  %103 = vmatpush1.xpose.msra.mxu0 0.0
  %104 = vmatprep.mubr.f32.mxu0 0.0
  %105 = vmatmul.mubr.f32.gmra.mrb[0].mxu0 %v35
  %v106 = vpop.f32.mrb[0].mxu0
  %v107 = vadd.f32 0.0, %v106
  %v108 = vpop.f32.mrb[0].mxu0
  %109 = vdwg.mxu0
  %v110 = vlaneseq
  %v111 = vand.u32 %v110, 127
  %vm112 = vcmp.eq.s32.totalorder %v20, %v111
  %v113 = vsel %vm112, 1.0, 0.0
  %v114 = vsub.f32 1.0, %v113
  %v115 = vmul.f32 %v107, %v114
  %v116 = vadd.f32 %v115, %v113
  %vm117 = vcmask 64512
  %v118 = vsel %vm117, %v116, 0.0
  %119 = vadd.xlane.f32.xlu0 %v118
  %v120 = vpop.xlane.xlu0 %119
  %v121 = vrsqrt.pop %v120
  %v122 = vld [vmem:[%s0 + $0x2] sm:$0x1]
  %v123 = vld [vmem:[%s0 + $0x3] sm:$0x1]
  %v124 = vlaneseq
  %v125 = vshrl.u32 %v124, 7
  %v126 = vsub.s32 0, %v125
  %v127 = vrot.slane %v123, %v126
  %vm128 = vcmp.eq.s32.totalorder %v20, %v127
  %v129 = vsel %vm128, 1.0, 0.0
  %v130 = vadd.s32 %v20, 8
  %v131 = vlaneseq
  %v132 = vshrl.u32 %v131, 7
  %v133 = vsub.s32 0, %v132
  %v134 = vrot.slane %v122, %v133
  %vm135 = vcmp.eq.s32.totalorder %v20, %v134
  %vm136 = vcmp.eq.s32.totalorder %v130, %v134
  %v137 = vsel %vm135, 1.0, 0.0
  %v138 = vsel %vm136, 1.0, 0.0
  %v140 = vsel %vm33, %v129, 0
  %v143 = vsel %vm33, %v137, 0
  %v146 = vsel %vm33, %v138, 0
  %148 = vmatprep.subr.mxu0 0.0
  %149 = vmatpush1.xpose.msra.mxu0 %v143
  %150 = vmatprep.subr.mxu0 0.0
  %151 = vmatpush1.xpose.msra.mxu0 %v146
  %152 = vmatprep.subr.mxu0 0.0
  %153 = vmatpush1.xpose.msra.mxu0 0.0
  %154 = vmatprep.subr.mxu0 0.0
  %155 = vmatpush1.xpose.msra.mxu0 0.0
  %156 = vmatprep.subr.mxu0 0.0
  %157 = vmatpush1.xpose.msra.mxu0 0.0
  %158 = vmatprep.subr.mxu0 0.0
  %159 = vmatpush1.xpose.msra.mxu0 0.0
  %160 = vmatprep.subr.mxu0 0.0
  %161 = vmatpush1.xpose.msra.mxu0 0.0
  %162 = vmatprep.subr.mxu0 0.0
  %163 = vmatpush1.xpose.msra.mxu0 0.0
  %164 = vmatprep.subr.mxu0 0.0
  %165 = vmatpush1.xpose.msra.mxu0 0.0
  %166 = vmatprep.subr.mxu0 0.0
  %167 = vmatpush1.xpose.msra.mxu0 0.0
  %168 = vmatprep.subr.mxu0 0.0
  %169 = vmatpush1.xpose.msra.mxu0 0.0
  %170 = vmatprep.subr.mxu0 0.0
  %171 = vmatpush1.xpose.msra.mxu0 0.0
  %172 = vmatprep.subr.mxu0 0.0
  %173 = vmatpush1.xpose.msra.mxu0 0.0
  %174 = vmatprep.subr.mxu0 0.0
  %175 = vmatpush1.xpose.msra.mxu0 0.0
  %176 = vmatprep.subr.mxu0 0.0
  %177 = vmatpush1.xpose.msra.mxu0 0.0
  %178 = vmatprep.subr.mxu0 0.0
  %179 = vmatpush1.xpose.msra.mxu0 0.0
  %180 = vmatprep.subr.mxu0 0.0
  %181 = vmatpush1.xpose.msra.mxu0 0.0
  %182 = vmatprep.subr.mxu0 0.0
  %183 = vmatpush1.xpose.msra.mxu0 0.0
  %184 = vmatprep.subr.mxu0 0.0
  %185 = vmatpush1.xpose.msra.mxu0 0.0
  %186 = vmatprep.subr.mxu0 0.0
  %187 = vmatpush1.xpose.msra.mxu0 0.0
  %188 = vmatprep.subr.mxu0 0.0
  %189 = vmatpush1.xpose.msra.mxu0 0.0
  %190 = vmatprep.subr.mxu0 0.0
  %191 = vmatpush1.xpose.msra.mxu0 0.0
  %192 = vmatprep.subr.mxu0 0.0
  %193 = vmatpush1.xpose.msra.mxu0 0.0
  %194 = vmatprep.subr.mxu0 0.0
  %195 = vmatpush1.xpose.msra.mxu0 0.0
  %196 = vmatprep.subr.mxu0 0.0
  %197 = vmatpush1.xpose.msra.mxu0 0.0
  %198 = vmatprep.subr.mxu0 0.0
  %199 = vmatpush1.xpose.msra.mxu0 0.0
  %200 = vmatprep.subr.mxu0 0.0
  %201 = vmatpush1.xpose.msra.mxu0 0.0
  %202 = vmatprep.subr.mxu0 0.0
  %203 = vmatpush1.xpose.msra.mxu0 0.0
  %204 = vmatprep.subr.mxu0 0.0
  %205 = vmatpush1.xpose.msra.mxu0 0.0
  %206 = vmatprep.subr.mxu0 0.0
  %207 = vmatpush1.xpose.msra.mxu0 0.0
  %208 = vmatprep.subr.mxu0 0.0
  %209 = vmatpush1.xpose.msra.mxu0 0.0
  %210 = vmatprep.subr.mxu0 0.0
  %211 = vmatpush1.xpose.msra.mxu0 0.0
  %212 = vmatprep.mubr.f32.mxu0 0.0
  %213 = vmatmul.mubr.f32.gmra.mrb[0].mxu0 %v140
  %v214 = vpop.f32.mrb[0].mxu0
  %v215 = vadd.f32 0.0, %v214
  %v216 = vpop.f32.mrb[0].mxu0
  %217 = vdwg.mxu0
  %v218 = vsel %vm33, %v215, 0.0
  %219 = vadd.xlane.f32.xlu0 %v218
  %v220 = vpop.xlane.xlu0 %219
  %vm221 = vcmp.gt.f32.partialorder %v220, 0.0
  %v222 = vmax.f32 %v220, 1.0
  %v223 = vrcp.pop %v222
  %v224 = vmul.f32 1.0, %v223
  %v225 = vsel %vm221, %v224, 0.0
  %v226 = vld [vmem:[%s1] sm:$0xff]
  %v227 = vmul.f32 %v121, %v226
  %v229 = vsel %vm117, %v116, 0
  %231 = vmatprep.subr.mxu0 0.0
  %232 = vmatpush1.msra.mxu0 %v227
  %233 = vmatprep.subr.mxu0 0.0
  %234 = vmatpush1.msra.mxu0 0.0
  %235 = vmatprep.subr.mxu0 0.0
  %236 = vmatpush1.msra.mxu0 0.0
  %237 = vmatprep.subr.mxu0 0.0
  %238 = vmatpush1.msra.mxu0 0.0
  %239 = vmatprep.subr.mxu0 0.0
  %240 = vmatpush1.msra.mxu0 0.0
  %241 = vmatprep.subr.mxu0 0.0
  %242 = vmatpush1.msra.mxu0 0.0
  %243 = vmatprep.subr.mxu0 0.0
  %244 = vmatpush1.msra.mxu0 0.0
  %245 = vmatprep.subr.mxu0 0.0
  %246 = vmatpush1.msra.mxu0 0.0
  %247 = vmatprep.subr.mxu0 0.0
  %248 = vmatpush1.msra.mxu0 0.0
  %249 = vmatprep.subr.mxu0 0.0
  %250 = vmatpush1.msra.mxu0 0.0
  %251 = vmatprep.subr.mxu0 0.0
  %252 = vmatpush1.msra.mxu0 0.0
  %253 = vmatprep.subr.mxu0 0.0
  %254 = vmatpush1.msra.mxu0 0.0
  %255 = vmatprep.subr.mxu0 0.0
  %256 = vmatpush1.msra.mxu0 0.0
  %257 = vmatprep.subr.mxu0 0.0
  %258 = vmatpush1.msra.mxu0 0.0
  %259 = vmatprep.subr.mxu0 0.0
  %260 = vmatpush1.msra.mxu0 0.0
  %261 = vmatprep.subr.mxu0 0.0
  %262 = vmatpush1.msra.mxu0 0.0
  %263 = vmatprep.subr.mxu0 0.0
  %264 = vmatpush1.msra.mxu0 0.0
  %265 = vmatprep.subr.mxu0 0.0
  %266 = vmatpush1.msra.mxu0 0.0
  %267 = vmatprep.subr.mxu0 0.0
  %268 = vmatpush1.msra.mxu0 0.0
  %269 = vmatprep.subr.mxu0 0.0
  %270 = vmatpush1.msra.mxu0 0.0
  %271 = vmatprep.subr.mxu0 0.0
  %272 = vmatpush1.msra.mxu0 0.0
  %273 = vmatprep.subr.mxu0 0.0
  %274 = vmatpush1.msra.mxu0 0.0
  %275 = vmatprep.subr.mxu0 0.0
  %276 = vmatpush1.msra.mxu0 0.0
  %277 = vmatprep.subr.mxu0 0.0
  %278 = vmatpush1.msra.mxu0 0.0
  %279 = vmatprep.subr.mxu0 0.0
  %280 = vmatpush1.msra.mxu0 0.0
  %281 = vmatprep.subr.mxu0 0.0
  %282 = vmatpush1.msra.mxu0 0.0
  %283 = vmatprep.subr.mxu0 0.0
  %284 = vmatpush1.msra.mxu0 0.0
  %285 = vmatprep.subr.mxu0 0.0
  %286 = vmatpush1.msra.mxu0 0.0
  %287 = vmatprep.subr.mxu0 0.0
  %288 = vmatpush1.msra.mxu0 0.0
  %289 = vmatprep.subr.mxu0 0.0
  %290 = vmatpush1.msra.mxu0 0.0
  %291 = vmatprep.subr.mxu0 0.0
  %292 = vmatpush1.msra.mxu0 0.0
  %293 = vmatprep.subr.mxu0 0.0
  %294 = vmatpush1.msra.mxu0 0.0
  %295 = vmatprep.mubr.f32.mxu0 0.0
  %296 = vmatmul.mubr.f32.gmra.mrb[0].mxu0 %v229
  %v297 = vpop.f32.mrb[0].mxu0
  %v298 = vadd.f32 0.0, %v297
  %v299 = vpop.f32.mrb[0].mxu0
  %300 = vdwg.mxu0
  %v301 = vmul.f32 %v121, %v298
  %v302 = vld [vmem:[%s2] sm:$0xff]
  %v303 = vld [vmem:[%s2 + $0x8] sm:$0x3]
  %v305 = vsel %vm33, %v215, 0
  %vm307 = vcmask 1041408
  %v309 = vsel %vm307, %v303, 0
  %311 = vmatprep.subr.mxu0 0.0
  %312 = vmatpush1.msra.mxu0 %v302
  %313 = vmatprep.subr.mxu0 0.0
  %314 = vmatpush1.msra.mxu0 %v309
  %315 = vmatprep.subr.mxu0 0.0
  %316 = vmatpush1.msra.mxu0 0.0
  %317 = vmatprep.subr.mxu0 0.0
  %318 = vmatpush1.msra.mxu0 0.0
  %319 = vmatprep.subr.mxu0 0.0
  %320 = vmatpush1.msra.mxu0 0.0
  %321 = vmatprep.subr.mxu0 0.0
  %322 = vmatpush1.msra.mxu0 0.0
  %323 = vmatprep.subr.mxu0 0.0
  %324 = vmatpush1.msra.mxu0 0.0
  %325 = vmatprep.subr.mxu0 0.0
  %326 = vmatpush1.msra.mxu0 0.0
  %327 = vmatprep.subr.mxu0 0.0
  %328 = vmatpush1.msra.mxu0 0.0
  %329 = vmatprep.subr.mxu0 0.0
  %330 = vmatpush1.msra.mxu0 0.0
  %331 = vmatprep.subr.mxu0 0.0
  %332 = vmatpush1.msra.mxu0 0.0
  %333 = vmatprep.subr.mxu0 0.0
  %334 = vmatpush1.msra.mxu0 0.0
  %335 = vmatprep.subr.mxu0 0.0
  %336 = vmatpush1.msra.mxu0 0.0
  %337 = vmatprep.subr.mxu0 0.0
  %338 = vmatpush1.msra.mxu0 0.0
  %339 = vmatprep.subr.mxu0 0.0
  %340 = vmatpush1.msra.mxu0 0.0
  %341 = vmatprep.subr.mxu0 0.0
  %342 = vmatpush1.msra.mxu0 0.0
  %343 = vmatprep.subr.mxu0 0.0
  %344 = vmatpush1.msra.mxu0 0.0
  %345 = vmatprep.subr.mxu0 0.0
  %346 = vmatpush1.msra.mxu0 0.0
  %347 = vmatprep.subr.mxu0 0.0
  %348 = vmatpush1.msra.mxu0 0.0
  %349 = vmatprep.subr.mxu0 0.0
  %350 = vmatpush1.msra.mxu0 0.0
  %351 = vmatprep.subr.mxu0 0.0
  %352 = vmatpush1.msra.mxu0 0.0
  %353 = vmatprep.subr.mxu0 0.0
  %354 = vmatpush1.msra.mxu0 0.0
  %355 = vmatprep.subr.mxu0 0.0
  %356 = vmatpush1.msra.mxu0 0.0
  %357 = vmatprep.subr.mxu0 0.0
  %358 = vmatpush1.msra.mxu0 0.0
  %359 = vmatprep.subr.mxu0 0.0
  %360 = vmatpush1.msra.mxu0 0.0
  %361 = vmatprep.subr.mxu0 0.0
  %362 = vmatpush1.msra.mxu0 0.0
  %363 = vmatprep.subr.mxu0 0.0
  %364 = vmatpush1.msra.mxu0 0.0
  %365 = vmatprep.subr.mxu0 0.0
  %366 = vmatpush1.msra.mxu0 0.0
  %367 = vmatprep.subr.mxu0 0.0
  %368 = vmatpush1.msra.mxu0 0.0
  %369 = vmatprep.subr.mxu0 0.0
  %370 = vmatpush1.msra.mxu0 0.0
  %371 = vmatprep.subr.mxu0 0.0
  %372 = vmatpush1.msra.mxu0 0.0
  %373 = vmatprep.subr.mxu0 0.0
  %374 = vmatpush1.msra.mxu0 0.0
  %375 = vmatprep.mubr.f32.mxu0 0.0
  %376 = vmatmul.mubr.f32.gmra.mrb[0].mxu0 %v305
  %v377 = vpop.f32.mrb[0].mxu0
  %v378 = vadd.f32 0.0, %v377
  %v379 = vpop.f32.mrb[0].mxu0
  %380 = vdwg.mxu0
  %v381 = vmul.f32 %v225, %v378
  %383 = vrot.lane.b32.xlu0 %v226, 16
  %v384 = vpop.permute.xlu0 %383
  %387 = vrot.lane.b32.xlu0 %v381, 32
  %v388 = vpop.permute.xlu0 %387
  %vm390 = vcmask 130048
  %v391 = vsel %vm390, %v301, %v384
  %vm392 = vcmask 261120
  %v393 = vsel %vm392, %v391, %v388
  %vm394 = vcmask 326656
  %v395 = vsel %vm394, %v393, 1.0
  %v396 = vld [vmem:[%s3] sm:$0x1]
  %v398 = vlaneseq
  %v399 = vshrl.u32 %v398, 7
  %v400 = vsub.s32 0, %v399
  %v401 = vrot.slane %v396, %v400
  %v403 = vmul.f32 %v395, %v401
  %vm404 = vcmask 334848
  %v405 = vsel %vm404, %v403, 0.0
  %406 = vadd.xlane.f32.xlu0 %v405
  %v407 = vpop.xlane.xlu0 %406
  %vm408 = vcmask 7168
  %409 = vst.msk [vmem:[%s4] sm:$0xff] %vm408, %v407
  // Predicated region
  $region18: #{hetero_conv_model_forward.1} parent=0 // pred_check
    _
  $region19: #{hetero_conv_model_forward.1} parent=0 // pred_check_branch
    %411 = sbr.rel (0) target = $region21
  $region20: #{hetero_conv_model_forward.1} parent=0 // pred_region
    _
  $region21: #{hetero_conv_model_forward.1} parent=0 // pred_fallthru
    _
  // Predicated region
  $region22: #{hetero_conv_model_forward.1} parent=0 // pred_check
    _
  $region23: #{hetero_conv_model_forward.1} parent=0 // pred_check_branch
    %413 = sbr.rel (0) target = $region25
  $region24: #{hetero_conv_model_forward.1} parent=0 // pred_region
    _
  $region25: #{hetero_conv_model_forward.1} parent=0 // pred_fallthru
    _

</llo_original>
